<compile_context>
chip_gen: v6e
topology: v6e:2x2x1
jax: 0.10.0
libtpu: 0.0.40
codegen_flags: <defaults>
</compile_context>

<pallas_src>
import numpy as np

import jax
import jax.numpy as jnp
from jax import lax
from jax.experimental import pallas as pl
from jax.experimental.pallas import tpu as pltpu

LANE = 128
TILE_M = 128        # molecules per output tile (one lane tile)
MAX_TILE_N = 1024   # atoms per reduction step once batches get large

# cache of per-batch-composition molecule-index buffers (static across steps)
_MOL_CACHE = {}


def _round_up(x, m):
    return (x + m - 1) // m * m


def sum_pool_kernel(mol_ref, vals_ref, out_ref):
    """Grid = (molecule_tiles [parallel], atom_tiles [arbitrary / reduction]).

    mol_ref : (TILE_N, 1)        int32  per-atom molecule index, -1 for padding
    vals_ref: (K, F_PAD, TILE_N) f32    per-atom values, atoms on lanes, zero padded
    out_ref : (K, TILE_M)        f32    per-molecule sums for this molecule tile
    """
    mt = pl.program_id(0)   # molecule tile (independent)
    s = pl.program_id(1)    # atom tile (reduction axis)

    @pl.when(s == 0)
    def _():
        out_ref[...] = jnp.zeros_like(out_ref)

    # one scalar per atom per key; feature padding is zero so it is harmless
    row = jnp.sum(vals_ref[...], axis=1)                                # (K, TILE_N)

    # one-hot membership of this atom tile in this molecule tile (VPU only,
    # no data-dependent gather); padded atoms carry mol index -1 -> all-zero row
    tile_n = mol_ref.shape[0]
    tile_m = out_ref.shape[-1]
    col = lax.broadcasted_iota(jnp.int32, (tile_n, tile_m), 1) + mt * tile_m
    onehot = (col == mol_ref[...]).astype(jnp.float32)                  # (TILE_N, TILE_M)

    # segment-sum == one small MXU matmul, accumulated across atom tiles into
    # the resident output block (lane-dense -> unmasked store)
    out_ref[...] += jnp.dot(row, onehot, preferred_element_type=jnp.float32)


def _mol_index_buffer(num_atoms):
    """Padded per-atom molecule-index buffer + tiling, cached per composition."""
    key = tuple(int(n) for n in num_atoms)
    hit = _MOL_CACHE.get(key)
    if hit is not None:
        return hit
    n_atoms = int(sum(key))
    if n_atoms <= MAX_TILE_N:
        n_pad = max(LANE, _round_up(n_atoms, LANE))
        tile_n = n_pad
    else:
        n_pad = _round_up(n_atoms, MAX_TILE_N)
        tile_n = MAX_TILE_N
    mol_np = np.full((n_pad, 1), -1, dtype=np.int32)          # -1 => no molecule
    mol_np[:n_atoms, 0] = np.repeat(np.arange(len(key), dtype=np.int32), key)
    entry = (jnp.asarray(mol_np), n_pad, tile_n)
    _MOL_CACHE[key] = entry
    return entry


def sum_pool_forward(batch, xyz, r_ij, nbrs, atomwise_output, grad_keys, out_keys=None):
    """Pallas implementation of SumPool.forward (scatter-add pooling).

    batch['num_atoms'] is a host-side sequence of ints (the torch module also
    pulls it to CPU via .detach().cpu().tolist()).  xyz / r_ij / nbrs are only
    consumed by the autograd branch and are accepted for API parity.
    """
    if grad_keys:
        # TODO(synk): grad_keys and 'stress' require autograd (compute_grad
        # w.r.t. xyz / r_ij) through the upstream network; wrap the full model
        # in jax.grad outside this forward kernel instead.
        raise NotImplementedError("grad_keys are not handled by the Pallas SumPool kernel")

    num_atoms = [int(n) for n in batch["num_atoms"]]
    n_mols = len(num_atoms)
    n_atoms = int(sum(num_atoms))

    if out_keys is None:
        out_keys = list(atomwise_output.keys())
    keys = [k for k in atomwise_output.keys() if k in out_keys]
    if not keys:
        return {}

    mol_pad, n_pad, tile_n = _mol_index_buffer(num_atoms)

    # ---- pack all keys into ONE lane-dense slab: (K, f_pad, n_pad) ----------
    per_key = []
    for k in keys:
        val = jnp.asarray(atomwise_output[k], dtype=jnp.float32)
        if val.size == n_atoms:                      # already one scalar per atom
            v = val.reshape(1, n_atoms)
        elif val.ndim == 2 and val.shape[0] == n_atoms:
            v = val.T                                # (F, n_atoms): sum features in-kernel
        elif val.ndim > 2 and val.shape[0] == n_atoms:
            # TODO(synk): torch sums only the LAST axis for ndim>2 values (the
            # pooled result is then vector-valued per molecule); not supported here.
            raise NotImplementedError(f"ndim>2 value for key {k} not supported")
        else:
            raise ValueError(f"Don't know how to handle val shape {val.shape} for key {k}")
        per_key.append(v)

    f_pad = max(v.shape[0] for v in per_key)
    slab = jnp.stack(
        [jnp.pad(v, ((0, f_pad - v.shape[0]), (0, n_pad - v.shape[1]))) for v in per_key]
    )                                                # (K, f_pad, n_pad), zero padded

    k_ct = len(keys)
    n_mol_lanes = max(TILE_M, _round_up(n_mols, TILE_M))
    grid = (n_mol_lanes // TILE_M, n_pad // tile_n)  # (parallel, arbitrary)

    pooled = pl.pallas_call(
        sum_pool_kernel,
        out_shape=jax.ShapeDtypeStruct((k_ct, n_mol_lanes), jnp.float32),
        grid=grid,
        in_specs=[
            pl.BlockSpec((tile_n, 1), lambda mt, s: (s, 0)),
            pl.BlockSpec((k_ct, f_pad, tile_n), lambda mt, s: (0, 0, s)),
        ],
        out_specs=pl.BlockSpec((k_ct, TILE_M), lambda mt, s: (0, mt)),
        compiler_params=pltpu.CompilerParams(
            dimension_semantics=("parallel", "arbitrary")),
    )(mol_pad, slab)

    return {k: pooled[i, :n_mols] for i, k in enumerate(keys)}


def reference(batch, atomwise_output, out_keys=None):
    """Pure-JAX replica of the PyTorch pooling path, for correctness checking."""
    num_atoms = [int(n) for n in batch["num_atoms"]]
    n_mols = len(num_atoms)
    mol_idx = jnp.asarray(np.repeat(np.arange(n_mols), num_atoms))
    if out_keys is None:
        out_keys = list(atomwise_output.keys())
    results = {}
    for k, val in atomwise_output.items():
        if k not in out_keys:
            continue
        val = jnp.asarray(val, jnp.float32)
        if val.reshape(-1).shape[0] == mol_idx.shape[0]:
            use_val = val.reshape(-1)
        else:
            use_val = val.sum(-1)
        results[k] = jax.ops.segment_sum(use_val, mol_idx, num_segments=n_mols)
    return results


def _run_case(key, num_atoms, feat_dim):
    n_atoms = int(sum(num_atoms))
    k1, k2, k3, k4 = jax.random.split(key, 4)
    batch = {"num_atoms": num_atoms}
    atomwise_output = {
        "energy": jax.random.normal(k1, (n_atoms, 1), jnp.float32),
        "features": jax.random.normal(k2, (n_atoms, feat_dim), jnp.float32),
    }
    # geometry tensors: only needed by the (untranslated) autograd branch
    xyz = jax.random.normal(k3, (n_atoms, 3), jnp.float32)
    nbrs = jnp.zeros((4, 2), jnp.int32)
    r_ij = jax.random.normal(k4, (4, 3), jnp.float32)

    results = sum_pool_forward(batch, xyz, r_ij, nbrs, atomwise_output, grad_keys=[])
    results = {k: jax.block_until_ready(v) for k, v in results.items()}

    ref = reference(batch, atomwise_output)
    for k in atomwise_output:
        assert results[k].shape == (len(num_atoms),), (k, results[k].shape)
        assert jnp.allclose(results[k], ref[k], atol=1e-4, rtol=1e-4), k


if __name__ == "__main__":
    key = jax.random.PRNGKey(0)
    k_small, k_big = jax.random.split(key)

    # small case: 3 molecules, 12 atoms -> single grid step
    _run_case(k_small, [3, 5, 4], feat_dim=4)

    # larger case: 200 molecules, ~1200 atoms -> exercises both the molecule
    # ('parallel') tiles and the atom-reduction ('arbitrary') accumulation
    num_atoms_big = [(i % 7) + 3 for i in range(200)]
    _run_case(k_big, num_atoms_big, feat_dim=4)

    print("KERNEL_OK")
</pallas_src>

<mosaic_0001>
module attributes {stable_mosaic.version = 11 : i64} {
  func.func @sum_pool_kernel(%arg0: i32, %arg1: i32, %arg2: memref<128x1xi32, #tpu.memory_space<vmem>>, %arg3: memref<2x4x128xf32, #tpu.memory_space<vmem>>, %arg4: memref<2x128xf32, #tpu.memory_space<vmem>>) attributes {dimension_semantics = [#tpu.dimension_semantics<parallel>, #tpu.dimension_semantics<arbitrary>], iteration_bounds = array<i64: 1, 1>, scalar_prefetch = 0 : i64, scratch_operands = 0 : i64, tpu.core_type = #tpu.core_type<tc>, window_params = [{transform_indices = @transform_0, window_bounds = array<i64: 128, 1>}, {transform_indices = @transform_1, window_bounds = array<i64: 2, 4, 128>}, {transform_indices = @transform_2, window_bounds = array<i64: 2, 128>}]} {
    %c0_i32 = arith.constant 0 : i32
    %0 = arith.cmpi eq, %arg1, %c0_i32 : i32
    %1 = arith.extui %0 : i1 to i32
    %c0_i32_0 = arith.constant 0 : i32
    %2 = arith.cmpi ne, %1, %c0_i32_0 : i32
    scf.if %2 {
      %cst_10 = arith.constant 0.000000e+00 : f32
      %18 = vector.broadcast %cst_10 : f32 to vector<2x128xf32>
      %c0_11 = arith.constant 0 : index
      %c0_12 = arith.constant 0 : index
      %19 = vector.load %arg4[%c0_11, %c0_12] : memref<2x128xf32, #tpu.memory_space<vmem>>, vector<2x128xf32>
      tpu.vector_store %arg4[%c0_11, %c0_12], %18 {strides = array<i32>} : memref<2x128xf32, #tpu.memory_space<vmem>>, vector<2x128xf32>,
    } else {
    }
    %c0 = arith.constant 0 : index
    %c0_1 = arith.constant 0 : index
    %c0_2 = arith.constant 0 : index
    %3 = vector.load %arg3[%c0, %c0_1, %c0_2] : memref<2x4x128xf32, #tpu.memory_space<vmem>>, vector<2x4x128xf32>
    %cst = arith.constant dense<0.000000e+00> : vector<2x128xf32>
    %4 = vector.multi_reduction <add>, %3, %cst [1] : vector<2x4x128xf32> to vector<2x128xf32>
    %5 = tpu.iota {dimensions = array<i32: 1>} : vector<128x128xi32>
    %c128_i32 = arith.constant 128 : i32
    %6 = arith.muli %arg0, %c128_i32 : i32
    %7 = vector.broadcast %6 : i32 to vector<128x128xi32>
    %8 = arith.addi %5, %7 : vector<128x128xi32>
    %c0_3 = arith.constant 0 : index
    %c0_4 = arith.constant 0 : index
    %9 = vector.load %arg2[%c0_3, %c0_4] : memref<128x1xi32, #tpu.memory_space<vmem>>, vector<128x1xi32>
    %10 = vector.broadcast %9 : vector<128x1xi32> to vector<128x128xi32>
    %11 = arith.cmpi eq, %8, %10 : vector<128x128xi32>
    %12 = arith.extui %11 : vector<128x128xi1> to vector<128x128xi32>
    %13 = arith.sitofp %12 : vector<128x128xi32> to vector<128x128xf32>
    %c0_5 = arith.constant 0 : index
    %c0_6 = arith.constant 0 : index
    %14 = vector.load %arg4[%c0_5, %c0_6] : memref<2x128xf32, #tpu.memory_space<vmem>>, vector<2x128xf32>
    %cst_7 = arith.constant dense<0.000000e+00> : vector<2x128xf32>
    %15 = tpu.matmul %4, %13, %cst_7 {dimension_numbers = #tpu.dot_dimension_numbers<[1], [0], [0], [1], [0, 0, 1, 1], [], []>} : vector<2x128xf32>, vector<128x128xf32>, vector<2x128xf32> -> vector<2x128xf32>
    %16 = arith.addf %14, %15 : vector<2x128xf32>
    %c0_8 = arith.constant 0 : index
    %c0_9 = arith.constant 0 : index
    %17 = vector.load %arg4[%c0_8, %c0_9] : memref<2x128xf32, #tpu.memory_space<vmem>>, vector<2x128xf32>
    tpu.vector_store %arg4[%c0_8, %c0_9], %16 {strides = array<i32>} : memref<2x128xf32, #tpu.memory_space<vmem>>, vector<2x128xf32>,
    return
  }
  func.func @transform_0(%arg0: i32, %arg1: i32) -> (i32, i32) {
    %c0_i32 = arith.constant 0 : i32
    %c0_i32_0 = arith.constant 0 : i32
    return %arg1, %c0_i32 : i32, i32
  }
  func.func @transform_1(%arg0: i32, %arg1: i32) -> (i32, i32, i32) {
    %c0_i32 = arith.constant 0 : i32
    %c0_i32_0 = arith.constant 0 : i32
    %c0_i32_1 = arith.constant 0 : i32
    return %c0_i32, %c0_i32_0, %arg1 : i32, i32, i32
  }
  func.func @transform_2(%arg0: i32, %arg1: i32) -> (i32, i32) {
    %c0_i32 = arith.constant 0 : i32
    %c0_i32_0 = arith.constant 0 : i32
    return %c0_i32, %arg0 : i32, i32
  }
}

</mosaic_0001>

<llo_original>
// kernel: tpu_custom_call.1
$region0: #{tpu_custom_call.1}
  #allocation0 [shape = 'u32[]', space=smem, size = 0x4, offset = 0x4, fixed_abs, tag = 'smem constant byte address 0x4 - core index']
  #allocation1 [shape = 'u32[144,128]{1,0:T(1,128)}', space=vmem, size = 0x12000, scoped, tag = 'internal scratch']
  %s0 = inlined_call_operand.vmem [shape: s32[128,1], index: 0, kind: input, shape index: {}]
  %s1 = inlined_call_operand.vmem [shape: f32[2,4,128], index: 1, kind: input, shape index: {}]
  %s2 = inlined_call_operand.hbm [shape: f32[2,128], index: 2, kind: output, shape index: {}]
  %s3 = sld [smem:[#allocation0]]
  $region22: #{tpu_custom_call.1} parent=0
    _
  %s5 = ssub.s32 1, %s3
  %s6 = scalar_select 0, %s5, %s3
  $region1: #{tpu_custom_call.1} parent=0
    #allocation2 [shape = 'u8[1024]{0}', space=vmem, size = 0x400, scoped, tag = 'output window, operand 0, single buffered']
    #allocation3 [shape = 's32[1]{0}', space=sflag, size = 0x4, scoped, tag = 'scoped memory for tpu_custom_call.1']
    %7 = vsyncpa [#allocation3], 0
    // Predicated region
    $region2: #{tpu_custom_call.1} parent=1 // pred_check
      _
    $region3: #{tpu_custom_call.1} parent=1 // pred_check_branch
      %9 = sbr.rel (0) target = $region5
    $region4: #{tpu_custom_call.1} parent=1 // pred_region
      _
    $region5: #{tpu_custom_call.1} parent=1 // pred_fallthru
      _
    // Predicated region
    $region6: #{tpu_custom_call.1} parent=1 // pred_check
      _
    $region7: #{tpu_custom_call.1} parent=1 // pred_check_branch
      %11 = sbr.rel (0) target = $region9
    $region8: #{tpu_custom_call.1} parent=1 // pred_region
      _
    $region9: #{tpu_custom_call.1} parent=1 // pred_fallthru
      _
    %p12 = scmp.eq.s32.totalorder 0, 0
    // Predicated region
    $region10: #{tpu_custom_call.1} parent=1 // pred_check
      %p13 = pneg %p12
    $region11: #{tpu_custom_call.1} parent=1 // pred_check_branch
      %15 = sbr.rel (%p13) target = $region13
    $region12: #{tpu_custom_call.1} parent=1 // pred_region
      %16 = vst [vmem:[#allocation2] sm:$0x3] 0.0
    $region13: #{tpu_custom_call.1} parent=1 // pred_fallthru
      _
    %v17 = vld [vmem:[%s1] sm:$0xf]
    %v18 = vld [vmem:[%s1 + $0x4] sm:$0xf]
    %vm19 = vcmask 1043456
    %v20 = vsel %vm19, %v17, 0.0
    %v21 = vrot.slane %v20, 4
    %v22 = vadd.f32 %v20, %v21
    %v23 = vrot.slane %v22, 2
    %v24 = vadd.f32 %v22, %v23
    %v25 = vrot.slane %v24, 1
    %v26 = vadd.f32 %v24, %v25
    %v27 = vsel %vm19, %v18, 0.0
    %v28 = vrot.slane %v27, 4
    %v29 = vadd.f32 %v27, %v28
    %v30 = vrot.slane %v29, 2
    %v31 = vadd.f32 %v29, %v30
    %v32 = vrot.slane %v31, 1
    %v33 = vadd.f32 %v31, %v32
    %v34 = vlaneseq
    %v35 = vand.u32 %v34, 127
    %s36 = smul.u32 0, 128
    %v37 = vstv %s36
    %v38 = vadd.s32 %v35, %v37
    %v39 = vld [vmem:[%s0] sm:$0xff]
    %v40 = vld [vmem:[%s0 + $0x8] sm:$0xff]
    %v41 = vld [vmem:[%s0 + $0x10] sm:$0xff]
    %v42 = vld [vmem:[%s0 + $0x18] sm:$0xff]
    %v43 = vld [vmem:[%s0 + $0x20] sm:$0xff]
    %v44 = vld [vmem:[%s0 + $0x28] sm:$0xff]
    %v45 = vld [vmem:[%s0 + $0x30] sm:$0xff]
    %v46 = vld [vmem:[%s0 + $0x38] sm:$0xff]
    %v47 = vld [vmem:[%s0 + $0x40] sm:$0xff]
    %v48 = vld [vmem:[%s0 + $0x48] sm:$0xff]
    %v49 = vld [vmem:[%s0 + $0x50] sm:$0xff]
    %v50 = vld [vmem:[%s0 + $0x58] sm:$0xff]
    %v51 = vld [vmem:[%s0 + $0x60] sm:$0xff]
    %v52 = vld [vmem:[%s0 + $0x68] sm:$0xff]
    %v53 = vld [vmem:[%s0 + $0x70] sm:$0xff]
    %v54 = vld [vmem:[%s0 + $0x78] sm:$0xff]
    %55 = vset.pattern.permute.xlu0 0
    %56 = vperm.xlu0 %55, %v39
    %v57 = vpop.permute.xlu0 %56
    %58 = vset.pattern.permute.xlu0 0
    %59 = vperm.xlu0 %58, %v40
    %v60 = vpop.permute.xlu0 %59
    %61 = vset.pattern.permute.xlu0 0
    %62 = vperm.xlu0 %61, %v41
    %v63 = vpop.permute.xlu0 %62
    %64 = vset.pattern.permute.xlu0 0
    %65 = vperm.xlu0 %64, %v42
    %v66 = vpop.permute.xlu0 %65
    %67 = vset.pattern.permute.xlu0 0
    %68 = vperm.xlu0 %67, %v43
    %v69 = vpop.permute.xlu0 %68
    %70 = vset.pattern.permute.xlu0 0
    %71 = vperm.xlu0 %70, %v44
    %v72 = vpop.permute.xlu0 %71
    %73 = vset.pattern.permute.xlu0 0
    %74 = vperm.xlu0 %73, %v45
    %v75 = vpop.permute.xlu0 %74
    %76 = vset.pattern.permute.xlu0 0
    %77 = vperm.xlu0 %76, %v46
    %v78 = vpop.permute.xlu0 %77
    %79 = vset.pattern.permute.xlu0 0
    %80 = vperm.xlu0 %79, %v47
    %v81 = vpop.permute.xlu0 %80
    %82 = vset.pattern.permute.xlu0 0
    %83 = vperm.xlu0 %82, %v48
    %v84 = vpop.permute.xlu0 %83
    %85 = vset.pattern.permute.xlu0 0
    %86 = vperm.xlu0 %85, %v49
    %v87 = vpop.permute.xlu0 %86
    %88 = vset.pattern.permute.xlu0 0
    %89 = vperm.xlu0 %88, %v50
    %v90 = vpop.permute.xlu0 %89
    %91 = vset.pattern.permute.xlu0 0
    %92 = vperm.xlu0 %91, %v51
    %v93 = vpop.permute.xlu0 %92
    %94 = vset.pattern.permute.xlu0 0
    %95 = vperm.xlu0 %94, %v52
    %v96 = vpop.permute.xlu0 %95
    %97 = vset.pattern.permute.xlu0 0
    %98 = vperm.xlu0 %97, %v53
    %v99 = vpop.permute.xlu0 %98
    %100 = vset.pattern.permute.xlu0 0
    %101 = vperm.xlu0 %100, %v54
    %v102 = vpop.permute.xlu0 %101
    %vm103 = vcmp.eq.s32.totalorder %v38, %v57
    %vm104 = vcmp.eq.s32.totalorder %v38, %v60
    %vm105 = vcmp.eq.s32.totalorder %v38, %v63
    %vm106 = vcmp.eq.s32.totalorder %v38, %v66
    %vm107 = vcmp.eq.s32.totalorder %v38, %v69
    %vm108 = vcmp.eq.s32.totalorder %v38, %v72
    %vm109 = vcmp.eq.s32.totalorder %v38, %v75
    %vm110 = vcmp.eq.s32.totalorder %v38, %v78
    %vm111 = vcmp.eq.s32.totalorder %v38, %v81
    %vm112 = vcmp.eq.s32.totalorder %v38, %v84
    %vm113 = vcmp.eq.s32.totalorder %v38, %v87
    %vm114 = vcmp.eq.s32.totalorder %v38, %v90
    %vm115 = vcmp.eq.s32.totalorder %v38, %v93
    %vm116 = vcmp.eq.s32.totalorder %v38, %v96
    %vm117 = vcmp.eq.s32.totalorder %v38, %v99
    %vm118 = vcmp.eq.s32.totalorder %v38, %v102
    %v119 = vsel %vm103, 1, 0
    %v120 = vsel %vm104, 1, 0
    %v121 = vsel %vm105, 1, 0
    %v122 = vsel %vm106, 1, 0
    %v123 = vsel %vm107, 1, 0
    %v124 = vsel %vm108, 1, 0
    %v125 = vsel %vm109, 1, 0
    %v126 = vsel %vm110, 1, 0
    %v127 = vsel %vm111, 1, 0
    %v128 = vsel %vm112, 1, 0
    %v129 = vsel %vm113, 1, 0
    %v130 = vsel %vm114, 1, 0
    %v131 = vsel %vm115, 1, 0
    %v132 = vsel %vm116, 1, 0
    %v133 = vsel %vm117, 1, 0
    %v134 = vsel %vm118, 1, 0
    %v135 = vcvt.s32.f32 %v119
    %v136 = vcvt.s32.f32 %v120
    %v137 = vcvt.s32.f32 %v121
    %v138 = vcvt.s32.f32 %v122
    %v139 = vcvt.s32.f32 %v123
    %v140 = vcvt.s32.f32 %v124
    %v141 = vcvt.s32.f32 %v125
    %v142 = vcvt.s32.f32 %v126
    %v143 = vcvt.s32.f32 %v127
    %v144 = vcvt.s32.f32 %v128
    %v145 = vcvt.s32.f32 %v129
    %v146 = vcvt.s32.f32 %v130
    %v147 = vcvt.s32.f32 %v131
    %v148 = vcvt.s32.f32 %v132
    %v149 = vcvt.s32.f32 %v133
    %v150 = vcvt.s32.f32 %v134
    %v151 = vld [vmem:[#allocation2] sm:$0x3]
    %vm154 = vcmask 1041409
    %v155 = vsel %vm154, %v33, %v26
    %157 = vmatprep.subr.mxu0 0.0
    %158 = vmatpush1.msra.mxu0 %v150
    %159 = vmatprep.subr.mxu0 0.0
    %160 = vmatpush1.msra.mxu0 %v149
    %161 = vmatprep.subr.mxu0 0.0
    %162 = vmatpush1.msra.mxu0 %v148
    %163 = vmatprep.subr.mxu0 0.0
    %164 = vmatpush1.msra.mxu0 %v147
    %165 = vmatprep.subr.mxu0 0.0
    %166 = vmatpush1.msra.mxu0 %v146
    %167 = vmatprep.subr.mxu0 0.0
    %168 = vmatpush1.msra.mxu0 %v145
    %169 = vmatprep.subr.mxu0 0.0
    %170 = vmatpush1.msra.mxu0 %v144
    %171 = vmatprep.subr.mxu0 0.0
    %172 = vmatpush1.msra.mxu0 %v143
    %173 = vmatprep.subr.mxu0 0.0
    %174 = vmatpush1.msra.mxu0 %v142
    %175 = vmatprep.subr.mxu0 0.0
    %176 = vmatpush1.msra.mxu0 %v141
    %177 = vmatprep.subr.mxu0 0.0
    %178 = vmatpush1.msra.mxu0 %v140
    %179 = vmatprep.subr.mxu0 0.0
    %180 = vmatpush1.msra.mxu0 %v139
    %181 = vmatprep.subr.mxu0 0.0
    %182 = vmatpush1.msra.mxu0 %v138
    %183 = vmatprep.subr.mxu0 0.0
    %184 = vmatpush1.msra.mxu0 %v137
    %185 = vmatprep.subr.mxu0 0.0
    %186 = vmatpush1.msra.mxu0 %v136
    %187 = vmatprep.subr.mxu0 0.0
    %188 = vmatpush1.msra.mxu0 %v135
    %189 = vmatprep.subr.mxu0 0.0
    %190 = vmatpush2.msra.mxu0 0.0
    %191 = vmatprep.subr.mxu0 0.0
    %192 = vmatpush2.msra.mxu0 0.0
    %193 = vmatprep.subr.mxu0 0.0
    %194 = vmatpush2.msra.mxu0 0.0
    %195 = vmatprep.subr.mxu0 0.0
    %196 = vmatpush2.msra.mxu0 0.0
    %197 = vmatprep.subr.mxu0 0.0
    %198 = vmatpush2.msra.mxu0 0.0
    %199 = vmatprep.subr.mxu0 0.0
    %200 = vmatpush2.msra.mxu0 0.0
    %201 = vmatprep.subr.mxu0 0.0
    %202 = vmatpush2.msra.mxu0 0.0
    %203 = vmatprep.subr.mxu0 0.0
    %204 = vmatpush2.msra.mxu0 0.0
    %205 = vmatprep.subr.mxu0 0.0
    %206 = vmatpush2.msra.mxu0 0.0
    %207 = vmatprep.subr.mxu0 0.0
    %208 = vmatpush2.msra.mxu0 0.0
    %209 = vmatprep.subr.mxu0 0.0
    %210 = vmatpush2.msra.mxu0 0.0
    %211 = vmatprep.subr.mxu0 0.0
    %212 = vmatpush2.msra.mxu0 0.0
    %213 = vmatprep.subr.mxu0 0.0
    %214 = vmatpush2.msra.mxu0 0.0
    %215 = vmatprep.subr.mxu0 0.0
    %216 = vmatpush2.msra.mxu0 0.0
    %217 = vmatprep.subr.mxu0 0.0
    %218 = vmatpush2.msra.mxu0 0.0
    %219 = vmatprep.subr.mxu0 0.0
    %220 = vmatpush2.msra.mxu0 0.0
    %221 = vmatprep.mubr.f32.mxu0 0.0
    %222 = vmatmul.mubr.f32.gmra.mxu0 %v155
    %v223 = vpop.f32.mrf.mxu0
    %v224 = vadd.f32 0.0, %v223
    %v225 = vpop.f32.mrf.mxu0
    %226 = vdwg.mxu0
    %v227 = vadd.f32 %v151, %v224
    %228 = vst [vmem:[#allocation2] sm:$0x3] %v227
    // Predicated region
    $region14: #{tpu_custom_call.1} parent=1 // pred_check
      _
    $region15: #{tpu_custom_call.1} parent=1 // pred_check_branch
      %230 = sbr.rel (0) target = $region17
    $region16: #{tpu_custom_call.1} parent=1 // pred_region
      %s232 = ssub.s32 32, 32
      %233 = vsyncadd [#allocation3], %s232
      %s235 = sshll.u32 [#allocation2], 4
      %s236 = int_to_ptr.vmem [resolvable:$true] %s235
      %238 = dma.vmem_to_hbm [thread:$0]  %s236, 32, %s2, [#allocation3]
    $region17: #{tpu_custom_call.1} parent=1 // pred_fallthru
      _
    // Predicated region
    $region18: #{tpu_custom_call.1} parent=1 // pred_check
      _
    $region19: #{tpu_custom_call.1} parent=1 // pred_check_branch
      %240 = sbr.rel (0) target = $region21
    $region20: #{tpu_custom_call.1} parent=1 // pred_region
      %241 = dma.done [#allocation3], 32
    $region21: #{tpu_custom_call.1} parent=1 // pred_fallthru
      _
    %242 = vsyncpa [#allocation3], 1

</llo_original>
